<compile_context>
chip_gen: v5e
topology: v5e:2x2
jax: 0.10.0
libtpu: 0.0.40
codegen_flags: <defaults>
</compile_context>

<pallas_src>
import jax
import jax.numpy as jnp
from jax.experimental import pallas as pl
from jax.experimental.pallas import tpu as pltpu


def _round_up(x: int, m: int) -> int:
    return ((x + m - 1) // m) * m


def _pad2(a, rows, cols):
    r, c = a.shape
    if r == rows and c == cols:
        return a
    return jnp.pad(a, ((0, rows - r), (0, cols - c)))


def _vmem_capacity_bytes() -> int:
    """Per-core VMEM capacity; conservative 64 MiB fallback (v7x)."""
    try:
        info = pltpu.get_tpu_info()
        cap = getattr(info, "vmem_capacity_bytes", None)
        if cap:
            return int(cap)
    except Exception:
        pass
    return 64 << 20


def _decoder_kernel(x_ref, w1_ref, b1_ref, w2_ref, b2_ref, w3_ref, b3_ref,
                    o_ref):
    """Fused 3-layer MLP forward for one batch tile.

    Matmuls run in the weight dtype (fp32 or bf16) with fp32 accumulation;
    bias adds and ReLU happen in fp32.  x is cast in-kernel (VPU, free under
    the MXU) so the wrapper never re-writes x in HBM.
    """
    cdt = w1_ref.dtype
    x = x_ref[...].astype(cdt)                                 # (tb, in_f)

    # Layer 1: Linear + ReLU
    h = jnp.dot(x, w1_ref[...], preferred_element_type=jnp.float32)
    h = jnp.maximum(h + b1_ref[...], 0.0)

    # Layer 2: Linear + ReLU
    h = jnp.dot(h.astype(cdt), w2_ref[...],
                preferred_element_type=jnp.float32)
    h = jnp.maximum(h + b2_ref[...], 0.0)

    # Layer 3: Linear (no activation)
    out = jnp.dot(h.astype(cdt), w3_ref[...],
                  preferred_element_type=jnp.float32)
    o_ref[...] = (out + b3_ref[...]).astype(o_ref.dtype)


def _forward_impl(z_captions, params, *, block_b, compute_dtype,
                  reconstruction_dim, single_buffer_weights):
    w1, b1, w2, b2, w3, b3 = (params["w1"], params["b1"], params["w2"],
                              params["b2"], params["w3"], params["b3"])
    B, in_features = z_captions.shape
    hid_p = _round_up(w1.shape[1], 128)
    rec_p = _round_up(w3.shape[1], 128)
    recon = int(reconstruction_dim) if reconstruction_dim is not None else int(w3.shape[1])
    out_dtype = z_captions.dtype
    cdt = jnp.dtype(compute_dtype) if compute_dtype is not None else jnp.dtype(w1.dtype)

    # Batch tile: multiple of 32 rows (covers fp32/bf16 sublane tilings).  No
    # batch padding -- the edge tile is clipped on writeback.
    if block_b is None:
        block_b = 256
    block_b = max(32, _round_up(int(block_b), 32))
    block_b = min(block_b, max(32, _round_up(B, 32)))
    grid = (pl.cdiv(B, block_b),)

    # Zero-pad weight N/K dims to lane multiples + cast to the compute dtype.
    # Zero padding is exact for matmul + bias + ReLU.  These are no-ops when
    # params were prepared once via prepare_target_decoder_params().
    w1_p = _pad2(w1, in_features, hid_p).astype(cdt)
    w2_p = _pad2(w2, hid_p, hid_p).astype(cdt)
    w3_p = _pad2(w3, hid_p, rec_p).astype(cdt)
    # Biases fp32 (added to the fp32 accumulator).
    b1_p = _pad2(jnp.reshape(b1, (1, -1)), 1, hid_p).astype(jnp.float32)
    b2_p = _pad2(jnp.reshape(b2, (1, -1)), 1, hid_p).astype(jnp.float32)
    b3_p = _pad2(jnp.reshape(b3, (1, -1)), 1, rec_p).astype(jnp.float32)

    # TODO(synk): add a weight-streaming fallback (second grid axis /
    # pltpu.emit_pipeline over hidden chunks with an fp32 accumulator) for
    # hidden sizes whose resident weights exceed the per-core VMEM budget
    # (large hidden on v7x); fp8 weights on v7x would also halve that footprint.

    def param_spec(shape):
        idx = lambda i, _n=len(shape): (0,) * _n
        if single_buffer_weights:
            # Loop-invariant operand: fetched once, single buffer -> half VMEM.
            return pl.BlockSpec(shape, idx, pipeline_mode=pl.Buffered(1))
        return pl.BlockSpec(shape, idx)

    in_specs = [
        pl.BlockSpec((block_b, in_features), lambda i: (i, 0)),   # x tile (pipelined)
        param_spec((in_features, hid_p)),                         # w1
        param_spec((1, hid_p)),                                   # b1
        param_spec((hid_p, hid_p)),                               # w2
        param_spec((1, hid_p)),                                   # b2
        param_spec((hid_p, rec_p)),                               # w3
        param_spec((1, rec_p)),                                   # b3
    ]
    out_specs = pl.BlockSpec((block_b, rec_p), lambda i: (i, 0))

    # Generation-aware scoped-VMEM budget: capacity minus 16 MiB headroom
    # (~112 MiB on v5e/v6e, ~48 MiB on v7x), never below 32 MiB.
    csize = cdt.itemsize
    xsize = jnp.dtype(out_dtype).itemsize
    w_bufs = 1 if single_buffer_weights else 2
    weight_bytes = (in_features * hid_p + hid_p * hid_p + hid_p * rec_p) * csize
    bias_bytes = (2 * hid_p + rec_p) * 4
    io_bytes = 2 * block_b * (in_features * xsize + rec_p * xsize)  # dbl-buffered x / out
    interm_bytes = block_b * (2 * hid_p * (4 + csize) + rec_p * 4 + in_features * csize)
    est = w_bufs * (weight_bytes + bias_bytes) + io_bytes + interm_bytes
    cap = _vmem_capacity_bytes()
    hard_cap = max(cap - (16 << 20), 32 << 20)
    vmem_limit = int(min(hard_cap, max(est + est // 4 + (8 << 20), 32 << 20)))

    flops = 2 * B * (in_features * hid_p + hid_p * hid_p + hid_p * rec_p)
    bytes_accessed = (B * in_features * xsize + weight_bytes + bias_bytes
                      + B * rec_p * xsize)
    cost = pl.CostEstimate(flops=flops, transcendentals=0,
                           bytes_accessed=bytes_accessed)

    out_padded = pl.pallas_call(
        _decoder_kernel,
        out_shape=jax.ShapeDtypeStruct((B, rec_p), out_dtype),
        grid=grid,
        in_specs=in_specs,
        out_specs=out_specs,
        compiler_params=pltpu.CompilerParams(
            dimension_semantics=("parallel",),
            vmem_limit_bytes=vmem_limit),
        cost_estimate=cost,
    )(z_captions, w1_p, b1_p, w2_p, b2_p, w3_p, b3_p)

    if rec_p == recon:
        return out_padded
    return out_padded[:, :recon]


_forward_jit = jax.jit(
    _forward_impl,
    static_argnames=("block_b", "compute_dtype", "reconstruction_dim",
                     "single_buffer_weights"))

# Tri-state cache for whether pipeline_mode=pl.Buffered(1) compiles on this
# JAX/Mosaic build: None = untested, True/False = probe result.
_SINGLE_BUFFER_WEIGHTS_OK = None


def target_decoder_forward(z_captions, params, *, block_b=None,
                           compute_dtype=None, reconstruction_dim=None,
                           single_buffer_weights=None):
    """Apply the TargetDecoder MLP to z_captions ([B, in_features]).

    `params` may be raw ([in,out] weights, any bias shape) or pre-padded /
    pre-cast via prepare_target_decoder_params (pass reconstruction_dim then).
    Compute dtype defaults to the weight dtype (fp32 weights -> exact fp32).
    """
    global _SINGLE_BUFFER_WEIGHTS_OK
    if single_buffer_weights is None:
        if _SINGLE_BUFFER_WEIGHTS_OK is None:
            try:
                out = _forward_jit(z_captions, params, block_b=block_b,
                                   compute_dtype=compute_dtype,
                                   reconstruction_dim=reconstruction_dim,
                                   single_buffer_weights=True)
                jax.block_until_ready(out)
                _SINGLE_BUFFER_WEIGHTS_OK = True
                return out
            except Exception:
                # pipeline_mode unsupported on this build -> double-buffered specs.
                _SINGLE_BUFFER_WEIGHTS_OK = False
        single_buffer_weights = _SINGLE_BUFFER_WEIGHTS_OK
    return _forward_jit(z_captions, params, block_b=block_b,
                        compute_dtype=compute_dtype,
                        reconstruction_dim=reconstruction_dim,
                        single_buffer_weights=single_buffer_weights)


def prepare_target_decoder_params(params, compute_dtype=None):
    """Hoist weight zero-padding + dtype cast out of the per-call hot path.

    Returns (prepared_params, reconstruction_dim).  Pass reconstruction_dim to
    target_decoder_forward so padded output columns are sliced off.
    """
    w1, b1, w2, b2, w3, b3 = (params["w1"], params["b1"], params["w2"],
                              params["b2"], params["w3"], params["b3"])
    in_features, hidden = w1.shape
    recon = int(w3.shape[1])
    hid_p = _round_up(hidden, 128)
    rec_p = _round_up(recon, 128)
    cdt = jnp.dtype(compute_dtype) if compute_dtype is not None else jnp.dtype(w1.dtype)
    prepared = {
        "w1": _pad2(w1, in_features, hid_p).astype(cdt),
        "b1": _pad2(jnp.reshape(b1, (1, -1)), 1, hid_p).astype(jnp.float32),
        "w2": _pad2(w2, hid_p, hid_p).astype(cdt),
        "b2": _pad2(jnp.reshape(b2, (1, -1)), 1, hid_p).astype(jnp.float32),
        "w3": _pad2(w3, hid_p, rec_p).astype(cdt),
        "b3": _pad2(jnp.reshape(b3, (1, -1)), 1, rec_p).astype(jnp.float32),
    }
    return prepared, recon


def init_target_decoder_params(key, in_features, hidden_features,
                               reconstruction_dim, dtype=jnp.float32):
    """Deterministic init mirroring the PyTorch module.

    Weights: xavier_uniform_ (bound = sqrt(6 / (fan_in + fan_out))).
    Biases:  nn.Linear default, uniform(-1/sqrt(fan_in), 1/sqrt(fan_in)).
    Weights are stored [in, out] (transposed vs PyTorch) for x @ W.
    """
    keys = jax.random.split(key, 6)

    def xavier(k, fan_in, fan_out):
        bound = (6.0 / (fan_in + fan_out)) ** 0.5
        return jax.random.uniform(k, (fan_in, fan_out), dtype,
                                  minval=-bound, maxval=bound)

    def bias(k, fan_in, fan_out):
        bound = 1.0 / (fan_in ** 0.5)
        return jax.random.uniform(k, (1, fan_out), dtype,
                                  minval=-bound, maxval=bound)

    return {
        "w1": xavier(keys[0], in_features, hidden_features),
        "b1": bias(keys[1], in_features, hidden_features),
        "w2": xavier(keys[2], hidden_features, hidden_features),
        "b2": bias(keys[3], hidden_features, hidden_features),
        "w3": xavier(keys[4], hidden_features, reconstruction_dim),
        "b3": bias(keys[5], hidden_features, reconstruction_dim),
    }


def _reference_forward(z, params):
    h1 = jnp.maximum(z @ params["w1"] + params["b1"], 0.0)
    h2 = jnp.maximum(h1 @ params["w2"] + params["b2"], 0.0)
    return h2 @ params["w3"] + params["b3"]


if __name__ == "__main__":
    # Small shapes consistent with the module's forward: z_captions [B, in].
    B, in_features, hidden_features, reconstruction_dim = 8, 32, 64, 48

    key = jax.random.PRNGKey(0)
    k_params, k_x = jax.random.split(key)

    params = init_target_decoder_params(k_params, in_features,
                                        hidden_features, reconstruction_dim)
    z_captions = jax.random.normal(k_x, (B, in_features), dtype=jnp.float32)

    ref = jax.block_until_ready(_reference_forward(z_captions, params))

    # Path 1: raw fp32 params (padding happens in-call; exact match vs fp32).
    out = jax.block_until_ready(target_decoder_forward(z_captions, params))
    assert out.shape == (B, reconstruction_dim)
    assert jnp.allclose(out, ref, atol=1e-5, rtol=1e-5)

    # Path 2: weights pre-padded + pre-cast to bf16 once (hoisted out of the
    # hot path); fp32 MXU accumulation, looser tolerance vs fp32 reference.
    prepared, recon = prepare_target_decoder_params(params,
                                                    compute_dtype=jnp.bfloat16)
    out_bf16 = jax.block_until_ready(
        target_decoder_forward(z_captions, prepared, reconstruction_dim=recon))
    assert out_bf16.shape == (B, reconstruction_dim)
    assert jnp.allclose(out_bf16, ref, atol=1e-1, rtol=1e-1)

    print("KERNEL_OK")
</pallas_src>

<mosaic_0001>
module attributes {stable_mosaic.version = 11 : i64} {
  func.func @_decoder_kernel(%arg0: i32, %arg1: memref<32x32xf32, #tpu.memory_space<vmem>>, %arg2: memref<32x128xf32, #tpu.memory_space<vmem>>, %arg3: memref<1x128xf32, #tpu.memory_space<vmem>>, %arg4: memref<128x128xf32, #tpu.memory_space<vmem>>, %arg5: memref<1x128xf32, #tpu.memory_space<vmem>>, %arg6: memref<128x128xf32, #tpu.memory_space<vmem>>, %arg7: memref<1x128xf32, #tpu.memory_space<vmem>>, %arg8: memref<32x128xf32, #tpu.memory_space<vmem>>) attributes {dimension_semantics = [#tpu.dimension_semantics<parallel>], iteration_bounds = array<i64: 1>, scalar_prefetch = 0 : i64, scratch_operands = 0 : i64, tpu.core_type = #tpu.core_type<tc>, window_params = [{transform_indices = @transform_0, window_bounds = array<i64: 32, 32>}, {pipeline_mode = #tpu.pipeline_mode<synchronous>, transform_indices = @transform_1, window_bounds = array<i64: 32, 128>}, {pipeline_mode = #tpu.pipeline_mode<synchronous>, transform_indices = @transform_2, window_bounds = array<i64: 1, 128>}, {pipeline_mode = #tpu.pipeline_mode<synchronous>, transform_indices = @transform_3, window_bounds = array<i64: 128, 128>}, {pipeline_mode = #tpu.pipeline_mode<synchronous>, transform_indices = @transform_4, window_bounds = array<i64: 1, 128>}, {pipeline_mode = #tpu.pipeline_mode<synchronous>, transform_indices = @transform_5, window_bounds = array<i64: 128, 128>}, {pipeline_mode = #tpu.pipeline_mode<synchronous>, transform_indices = @transform_6, window_bounds = array<i64: 1, 128>}, {transform_indices = @transform_7, window_bounds = array<i64: 32, 128>}]} {
    %c0 = arith.constant 0 : index
    %c0_0 = arith.constant 0 : index
    %0 = vector.load %arg1[%c0, %c0_0] : memref<32x32xf32, #tpu.memory_space<vmem>>, vector<32x32xf32>
    %c0_1 = arith.constant 0 : index
    %c0_2 = arith.constant 0 : index
    %1 = vector.load %arg2[%c0_1, %c0_2] : memref<32x128xf32, #tpu.memory_space<vmem>>, vector<32x128xf32>
    %cst = arith.constant dense<0.000000e+00> : vector<32x128xf32>
    %2 = tpu.matmul %0, %1, %cst {dimension_numbers = #tpu.dot_dimension_numbers<[1], [0], [0], [1], [0, 0, 1, 1], [], []>} : vector<32x32xf32>, vector<32x128xf32>, vector<32x128xf32> -> vector<32x128xf32>
    %c0_3 = arith.constant 0 : index
    %c0_4 = arith.constant 0 : index
    %3 = vector.load %arg3[%c0_3, %c0_4] : memref<1x128xf32, #tpu.memory_space<vmem>>, vector<1x128xf32>
    %4 = vector.broadcast %3 : vector<1x128xf32> to vector<32x128xf32>
    %5 = arith.addf %2, %4 : vector<32x128xf32>
    %cst_5 = arith.constant 0.000000e+00 : f32
    %6 = vector.broadcast %cst_5 : f32 to vector<32x128xf32>
    %7 = arith.maximumf %5, %6 : vector<32x128xf32>
    %c0_6 = arith.constant 0 : index
    %c0_7 = arith.constant 0 : index
    %8 = vector.load %arg4[%c0_6, %c0_7] : memref<128x128xf32, #tpu.memory_space<vmem>>, vector<128x128xf32>
    %cst_8 = arith.constant dense<0.000000e+00> : vector<32x128xf32>
    %9 = tpu.matmul %7, %8, %cst_8 {dimension_numbers = #tpu.dot_dimension_numbers<[1], [0], [0], [1], [0, 0, 1, 1], [], []>} : vector<32x128xf32>, vector<128x128xf32>, vector<32x128xf32> -> vector<32x128xf32>
    %c0_9 = arith.constant 0 : index
    %c0_10 = arith.constant 0 : index
    %10 = vector.load %arg5[%c0_9, %c0_10] : memref<1x128xf32, #tpu.memory_space<vmem>>, vector<1x128xf32>
    %11 = vector.broadcast %10 : vector<1x128xf32> to vector<32x128xf32>
    %12 = arith.addf %9, %11 : vector<32x128xf32>
    %cst_11 = arith.constant 0.000000e+00 : f32
    %13 = vector.broadcast %cst_11 : f32 to vector<32x128xf32>
    %14 = arith.maximumf %12, %13 : vector<32x128xf32>
    %c0_12 = arith.constant 0 : index
    %c0_13 = arith.constant 0 : index
    %15 = vector.load %arg6[%c0_12, %c0_13] : memref<128x128xf32, #tpu.memory_space<vmem>>, vector<128x128xf32>
    %cst_14 = arith.constant dense<0.000000e+00> : vector<32x128xf32>
    %16 = tpu.matmul %14, %15, %cst_14 {dimension_numbers = #tpu.dot_dimension_numbers<[1], [0], [0], [1], [0, 0, 1, 1], [], []>} : vector<32x128xf32>, vector<128x128xf32>, vector<32x128xf32> -> vector<32x128xf32>
    %c0_15 = arith.constant 0 : index
    %c0_16 = arith.constant 0 : index
    %17 = vector.load %arg7[%c0_15, %c0_16] : memref<1x128xf32, #tpu.memory_space<vmem>>, vector<1x128xf32>
    %18 = vector.broadcast %17 : vector<1x128xf32> to vector<32x128xf32>
    %19 = arith.addf %16, %18 : vector<32x128xf32>
    %c0_17 = arith.constant 0 : index
    %c0_18 = arith.constant 0 : index
    %20 = vector.load %arg8[%c0_17, %c0_18] : memref<32x128xf32, #tpu.memory_space<vmem>>, vector<32x128xf32>
    tpu.vector_store %arg8[%c0_17, %c0_18], %19 {strides = array<i32>} : memref<32x128xf32, #tpu.memory_space<vmem>>, vector<32x128xf32>,
    return
  }
  func.func @transform_0(%arg0: i32) -> (i32, i32) {
    %c0_i32 = arith.constant 0 : i32
    %c0_i32_0 = arith.constant 0 : i32
    return %arg0, %c0_i32 : i32, i32
  }
  func.func @transform_1(%arg0: i32) -> (i32, i32) {
    %c0_i32 = arith.constant 0 : i32
    %c0_i32_0 = arith.constant 0 : i32
    %c0_i32_1 = arith.constant 0 : i32
    return %c0_i32, %c0_i32_0 : i32, i32
  }
  func.func @transform_2(%arg0: i32) -> (i32, i32) {
    %c0_i32 = arith.constant 0 : i32
    %c0_i32_0 = arith.constant 0 : i32
    %c0_i32_1 = arith.constant 0 : i32
    return %c0_i32, %c0_i32_0 : i32, i32
  }
  func.func @transform_3(%arg0: i32) -> (i32, i32) {
    %c0_i32 = arith.constant 0 : i32
    %c0_i32_0 = arith.constant 0 : i32
    %c0_i32_1 = arith.constant 0 : i32
    return %c0_i32, %c0_i32_0 : i32, i32
  }
  func.func @transform_4(%arg0: i32) -> (i32, i32) {
    %c0_i32 = arith.constant 0 : i32
    %c0_i32_0 = arith.constant 0 : i32
    %c0_i32_1 = arith.constant 0 : i32
    return %c0_i32, %c0_i32_0 : i32, i32
  }
  func.func @transform_5(%arg0: i32) -> (i32, i32) {
    %c0_i32 = arith.constant 0 : i32
    %c0_i32_0 = arith.constant 0 : i32
    %c0_i32_1 = arith.constant 0 : i32
    return %c0_i32, %c0_i32_0 : i32, i32
  }
  func.func @transform_6(%arg0: i32) -> (i32, i32) {
    %c0_i32 = arith.constant 0 : i32
    %c0_i32_0 = arith.constant 0 : i32
    %c0_i32_1 = arith.constant 0 : i32
    return %c0_i32, %c0_i32_0 : i32, i32
  }
  func.func @transform_7(%arg0: i32) -> (i32, i32) {
    %c0_i32 = arith.constant 0 : i32
    %c0_i32_0 = arith.constant 0 : i32
    return %arg0, %c0_i32 : i32, i32
  }
}

module attributes {stable_mosaic.version = 11 : i64} {
  func.func @_decoder_kernel(%arg0: i32, %arg1: memref<32x32xf32, #tpu.memory_space<vmem>>, %arg2: memref<32x128xf32, #tpu.memory_space<vmem>>, %arg3: memref<1x128xf32, #tpu.memory_space<vmem>>, %arg4: memref<128x128xf32, #tpu.memory_space<vmem>>, %arg5: memref<1x128xf32, #tpu.memory_space<vmem>>, %arg6: memref<128x128xf32, #tpu.memory_space<vmem>>, %arg7: memref<1x128xf32, #tpu.memory_space<vmem>>, %arg8: memref<32x128xf32, #tpu.memory_space<vmem>>) attributes {dimension_semantics = [#tpu.dimension_semantics<parallel>], iteration_bounds = array<i64: 1>, scalar_prefetch = 0 : i64, scratch_operands = 0 : i64, tpu.core_type = #tpu.core_type<tc>, window_params = [{transform_indices = @transform_0, window_bounds = array<i64: 32, 32>}, {pipeline_mode = #tpu.pipeline_mode<synchronous>, transform_indices = @transform_1, window_bounds = array<i64: 32, 128>}, {pipeline_mode = #tpu.pipeline_mode<synchronous>, transform_indices = @transform_2, window_bounds = array<i64: 1, 128>}, {pipeline_mode = #tpu.pipeline_mode<synchronous>, transform_indices = @transform_3, window_bounds = array<i64: 128, 128>}, {pipeline_mode = #tpu.pipeline_mode<synchronous>, transform_indices = @transform_4, window_bounds = array<i64: 1, 128>}, {pipeline_mode = #tpu.pipeline_mode<synchronous>, transform_indices = @transform_5, window_bounds = array<i64: 128, 128>}, {pipeline_mode = #tpu.pipeline_mode<synchronous>, transform_indices = @transform_6, window_bounds = array<i64: 1, 128>}, {transform_indices = @transform_7, window_bounds = array<i64: 32, 128>}]} {
    %c0 = arith.constant 0 : index
    %c0_0 = arith.constant 0 : index
    %0 = vector.load %arg1[%c0, %c0_0] : memref<32x32xf32, #tpu.memory_space<vmem>>, vector<32x32xf32>
    %c0_1 = arith.constant 0 : index
    %c0_2 = arith.constant 0 : index
    %1 = vector.load %arg2[%c0_1, %c0_2] : memref<32x128xf32, #tpu.memory_space<vmem>>, vector<32x128xf32>
    %cst = arith.constant dense<0.000000e+00> : vector<32x128xf32>
    %2 = tpu.matmul %0, %1, %cst {dimension_numbers = #tpu.dot_dimension_numbers<[1], [0], [0], [1], [0, 0, 1, 1], [], []>} : vector<32x32xf32>, vector<32x128xf32>, vector<32x128xf32> -> vector<32x128xf32>
    %c0_3 = arith.constant 0 : index
    %c0_4 = arith.constant 0 : index
    %3 = vector.load %arg3[%c0_3, %c0_4] : memref<1x128xf32, #tpu.memory_space<vmem>>, vector<1x128xf32>
    %4 = vector.broadcast %3 : vector<1x128xf32> to vector<32x128xf32>
    %5 = arith.addf %2, %4 : vector<32x128xf32>
    %cst_5 = arith.constant 0.000000e+00 : f32
    %6 = vector.broadcast %cst_5 : f32 to vector<32x128xf32>
    %7 = arith.maximumf %5, %6 : vector<32x128xf32>
    %c0_6 = arith.constant 0 : index
    %c0_7 = arith.constant 0 : index
    %8 = vector.load %arg4[%c0_6, %c0_7] : memref<128x128xf32, #tpu.memory_space<vmem>>, vector<128x128xf32>
    %cst_8 = arith.constant dense<0.000000e+00> : vector<32x128xf32>
    %9 = tpu.matmul %7, %8, %cst_8 {dimension_numbers = #tpu.dot_dimension_numbers<[1], [0], [0], [1], [0, 0, 1, 1], [], []>} : vector<32x128xf32>, vector<128x128xf32>, vector<32x128xf32> -> vector<32x128xf32>
    %c0_9 = arith.constant 0 : index
    %c0_10 = arith.constant 0 : index
    %10 = vector.load %arg5[%c0_9, %c0_10] : memref<1x128xf32, #tpu.memory_space<vmem>>, vector<1x128xf32>
    %11 = vector.broadcast %10 : vector<1x128xf32> to vector<32x128xf32>
    %12 = arith.addf %9, %11 : vector<32x128xf32>
    %cst_11 = arith.constant 0.000000e+00 : f32
    %13 = vector.broadcast %cst_11 : f32 to vector<32x128xf32>
    %14 = arith.maximumf %12, %13 : vector<32x128xf32>
    %c0_12 = arith.constant 0 : index
    %c0_13 = arith.constant 0 : index
    %15 = vector.load %arg6[%c0_12, %c0_13] : memref<128x128xf32, #tpu.memory_space<vmem>>, vector<128x128xf32>
    %cst_14 = arith.constant dense<0.000000e+00> : vector<32x128xf32>
    %16 = tpu.matmul %14, %15, %cst_14 {dimension_numbers = #tpu.dot_dimension_numbers<[1], [0], [0], [1], [0, 0, 1, 1], [], []>} : vector<32x128xf32>, vector<128x128xf32>, vector<32x128xf32> -> vector<32x128xf32>
    %c0_15 = arith.constant 0 : index
    %c0_16 = arith.constant 0 : index
    %17 = vector.load %arg7[%c0_15, %c0_16] : memref<1x128xf32, #tpu.memory_space<vmem>>, vector<1x128xf32>
    %18 = vector.broadcast %17 : vector<1x128xf32> to vector<32x128xf32>
    %19 = arith.addf %16, %18 : vector<32x128xf32>
    %c0_17 = arith.constant 0 : index
    %c0_18 = arith.constant 0 : index
    %20 = vector.load %arg8[%c0_17, %c0_18] : memref<32x128xf32, #tpu.memory_space<vmem>>, vector<32x128xf32>
    tpu.vector_store %arg8[%c0_17, %c0_18], %19 {strides = array<i32>} : memref<32x128xf32, #tpu.memory_space<vmem>>, vector<32x128xf32>,
    return
  }
  func.func @transform_0(%arg0: i32) -> (i32, i32) {
    %c0_i32 = arith.constant 0 : i32
    %c0_i32_0 = arith.constant 0 : i32
    return %arg0, %c0_i32 : i32, i32
  }
  func.func @transform_1(%arg0: i32) -> (i32, i32) {
    %c0_i32 = arith.constant 0 : i32
    %c0_i32_0 = arith.constant 0 : i32
    %c0_i32_1 = arith.constant 0 : i32
    return %c0_i32, %c0_i32_0 : i32, i32
  }
  func.func @transform_2(%arg0: i32) -> (i32, i32) {
    %c0_i32 = arith.constant 0 : i32
    %c0_i32_0 = arith.constant 0 : i32
    %c0_i32_1 = arith.constant 0 : i32
    return %c0_i32, %c0_i32_0 : i32, i32
  }
  func.func @transform_3(%arg0: i32) -> (i32, i32) {
    %c0_i32 = arith.constant 0 : i32
    %c0_i32_0 = arith.constant 0 : i32
    %c0_i32_1 = arith.constant 0 : i32
    return %c0_i32, %c0_i32_0 : i32, i32
  }
  func.func @transform_4(%arg0: i32) -> (i32, i32) {
    %c0_i32 = arith.constant 0 : i32
    %c0_i32_0 = arith.constant 0 : i32
    %c0_i32_1 = arith.constant 0 : i32
    return %c0_i32, %c0_i32_0 : i32, i32
  }
  func.func @transform_5(%arg0: i32) -> (i32, i32) {
    %c0_i32 = arith.constant 0 : i32
    %c0_i32_0 = arith.constant 0 : i32
    %c0_i32_1 = arith.constant 0 : i32
    return %c0_i32, %c0_i32_0 : i32, i32
  }
  func.func @transform_6(%arg0: i32) -> (i32, i32) {
    %c0_i32 = arith.constant 0 : i32
    %c0_i32_0 = arith.constant 0 : i32
    %c0_i32_1 = arith.constant 0 : i32
    return %c0_i32, %c0_i32_0 : i32, i32
  }
  func.func @transform_7(%arg0: i32) -> (i32, i32) {
    %c0_i32 = arith.constant 0 : i32
    %c0_i32_0 = arith.constant 0 : i32
    return %arg0, %c0_i32 : i32, i32
  }
}

</mosaic_0001>

<llo_original>
// kernel: _forward_impl.1
$region0: #{_forward_impl.1}
  #allocation0 [shape = 'u32[]', space=smem, size = 0x4, offset = 0x4, fixed_abs, tag = 'smem constant byte address 0x4 - core index']
  #allocation1 [shape = 'u32[72,128]{1,0:T(1,128)}', space=vmem, size = 0x9000, scoped, tag = 'internal scratch']
  %s0 = inlined_call_operand.vmem [shape: f32[8,32], index: 0, kind: input, shape index: {}]
  %s1 = inlined_call_operand.vmem [shape: f32[32,128], index: 1, kind: input, shape index: {}]
  %s2 = inlined_call_operand.vmem [shape: f32[1,128], index: 2, kind: input, shape index: {}]
  %s3 = inlined_call_operand.vmem [shape: f32[128,128], index: 3, kind: input, shape index: {}]
  %s4 = inlined_call_operand.vmem [shape: f32[1,128], index: 4, kind: input, shape index: {}]
  %s5 = inlined_call_operand.vmem [shape: f32[128,128], index: 5, kind: input, shape index: {}]
  %s6 = inlined_call_operand.vmem [shape: f32[1,128], index: 6, kind: input, shape index: {}]
  %s7 = inlined_call_operand.hbm [shape: f32[8,128], index: 7, kind: output, shape index: {}]
  %s8 = sld [smem:[#allocation0]]
  $region38: #{_forward_impl.1} parent=0
    _
  %s10 = ssub.s32 1, %s8
  %s11 = scalar_select 0, %s10, %s8
  $region1: #{_forward_impl.1} parent=0
    #allocation2 [shape = 'u8[16384]{0}', space=vmem, size = 0x4000, scoped, tag = 'output window, operand 0, single buffered']
    #allocation3 [shape = 's32[1]{0}', space=sflag, size = 0x4, scoped, tag = 'scoped memory for _forward_impl.1']
    %12 = vsyncpa [#allocation3], 0
    // Predicated region
    $region2: #{_forward_impl.1} parent=1 // pred_check
      _
    $region3: #{_forward_impl.1} parent=1 // pred_check_branch
      %14 = sbr.rel (0) target = $region5
    $region4: #{_forward_impl.1} parent=1 // pred_region
      _
    $region5: #{_forward_impl.1} parent=1 // pred_fallthru
      _
    // Predicated region
    $region6: #{_forward_impl.1} parent=1 // pred_check
      _
    $region7: #{_forward_impl.1} parent=1 // pred_check_branch
      %16 = sbr.rel (0) target = $region9
    $region8: #{_forward_impl.1} parent=1 // pred_region
      _
    $region9: #{_forward_impl.1} parent=1 // pred_fallthru
      _
    // Predicated region
    $region10: #{_forward_impl.1} parent=1 // pred_check
      _
    $region11: #{_forward_impl.1} parent=1 // pred_check_branch
      %18 = sbr.rel (0) target = $region13
    $region12: #{_forward_impl.1} parent=1 // pred_region
      _
    $region13: #{_forward_impl.1} parent=1 // pred_fallthru
      _
    // Predicated region
    $region14: #{_forward_impl.1} parent=1 // pred_check
      _
    $region15: #{_forward_impl.1} parent=1 // pred_check_branch
      %20 = sbr.rel (0) target = $region17
    $region16: #{_forward_impl.1} parent=1 // pred_region
      _
    $region17: #{_forward_impl.1} parent=1 // pred_fallthru
      _
    // Predicated region
    $region18: #{_forward_impl.1} parent=1 // pred_check
      _
    $region19: #{_forward_impl.1} parent=1 // pred_check_branch
      %22 = sbr.rel (0) target = $region21
    $region20: #{_forward_impl.1} parent=1 // pred_region
      _
    $region21: #{_forward_impl.1} parent=1 // pred_fallthru
      _
    // Predicated region
    $region22: #{_forward_impl.1} parent=1 // pred_check
      _
    $region23: #{_forward_impl.1} parent=1 // pred_check_branch
      %24 = sbr.rel (0) target = $region25
    $region24: #{_forward_impl.1} parent=1 // pred_region
      _
    $region25: #{_forward_impl.1} parent=1 // pred_fallthru
      _
    // Predicated region
    $region26: #{_forward_impl.1} parent=1 // pred_check
      _
    $region27: #{_forward_impl.1} parent=1 // pred_check_branch
      %26 = sbr.rel (0) target = $region29
    $region28: #{_forward_impl.1} parent=1 // pred_region
      _
    $region29: #{_forward_impl.1} parent=1 // pred_fallthru
      _
    %v27 = vld [vmem:[%s0] sm:$0xff]
    %v28 = vld [vmem:[%s0 + $0x8] sm:$0xff]
    %v29 = vld [vmem:[%s0 + $0x10] sm:$0xff]
    %v30 = vld [vmem:[%s0 + $0x18] sm:$0xff]
    %v31 = vld [vmem:[%s1] sm:$0xff]
    %v32 = vld [vmem:[%s1 + $0x8] sm:$0xff]
    %v33 = vld [vmem:[%s1 + $0x10] sm:$0xff]
    %v34 = vld [vmem:[%s1 + $0x18] sm:$0xff]
    %v35 = vld [vmem:[%s2] sm:$0x1]
    %v37 = vperm.slane %v35, 0
    %vm39 = vcmask 261120
    %v41 = vsel %vm39, %v27, 0
    %v44 = vsel %vm39, %v28, 0
    %v47 = vsel %vm39, %v29, 0
    %v50 = vsel %vm39, %v30, 0
    %52 = vmatpush.msra.mxu0 0.0
    %53 = vmatpush.msra.mxu0 0.0
    %54 = vmatpush.msra.mxu0 0.0
    %55 = vmatpush.msra.mxu0 0.0
    %56 = vmatpush.msra.mxu0 0.0
    %57 = vmatpush.msra.mxu0 0.0
    %58 = vmatpush.msra.mxu0 0.0
    %59 = vmatpush.msra.mxu0 0.0
    %60 = vmatpush.msra.mxu0 0.0
    %61 = vmatpush.msra.mxu0 0.0
    %62 = vmatpush.msra.mxu0 0.0
    %63 = vmatpush.msra.mxu0 0.0
    %64 = vmatpush.msra.mxu0 %v34
    %65 = vmatpush.msra.mxu0 %v33
    %66 = vmatpush.msra.mxu0 %v32
    %67 = vmatpush.msra.mxu0 %v31
    %68 = vmatmul.f32.gmra.mxu0 %v41
    %v69 = vpop.f32.mrf.mxu0
    %v70 = vadd.f32 %v37, %v69
    %71 = vmatmul.f32.gmra.mxu0 %v44
    %v72 = vpop.f32.mrf.mxu0
    %v73 = vadd.f32 %v37, %v72
    %74 = vmatmul.f32.gmra.mxu0 %v47
    %v75 = vpop.f32.mrf.mxu0
    %v76 = vadd.f32 %v37, %v75
    %77 = vmatmul.f32.gmra.mxu0 %v50
    %v78 = vpop.f32.mrf.mxu0
    %v79 = vadd.f32 %v37, %v78
    %80 = vdwg.mxu0
    %v81 = vmax.f32 %v70, 0.0
    %v82 = vmax.f32 %v73, 0.0
    %v83 = vmax.f32 %v76, 0.0
    %v84 = vmax.f32 %v79, 0.0
    %v85 = vld [vmem:[%s3] sm:$0xff]
    %v86 = vld [vmem:[%s3 + $0x8] sm:$0xff]
    %v87 = vld [vmem:[%s3 + $0x10] sm:$0xff]
    %v88 = vld [vmem:[%s3 + $0x18] sm:$0xff]
    %v89 = vld [vmem:[%s3 + $0x20] sm:$0xff]
    %v90 = vld [vmem:[%s3 + $0x28] sm:$0xff]
    %v91 = vld [vmem:[%s3 + $0x30] sm:$0xff]
    %v92 = vld [vmem:[%s3 + $0x38] sm:$0xff]
    %v93 = vld [vmem:[%s3 + $0x40] sm:$0xff]
    %v94 = vld [vmem:[%s3 + $0x48] sm:$0xff]
    %v95 = vld [vmem:[%s3 + $0x50] sm:$0xff]
    %v96 = vld [vmem:[%s3 + $0x58] sm:$0xff]
    %v97 = vld [vmem:[%s3 + $0x60] sm:$0xff]
    %v98 = vld [vmem:[%s3 + $0x68] sm:$0xff]
    %v99 = vld [vmem:[%s3 + $0x70] sm:$0xff]
    %v100 = vld [vmem:[%s3 + $0x78] sm:$0xff]
    %v101 = vld [vmem:[%s4] sm:$0x1]
    %v103 = vperm.slane %v101, 0
    %105 = vmatpush.msra.mxu0 %v100
    %106 = vmatpush.msra.mxu0 %v99
    %107 = vmatpush.msra.mxu0 %v98
    %108 = vmatpush.msra.mxu0 %v97
    %109 = vmatpush.msra.mxu0 %v96
    %110 = vmatpush.msra.mxu0 %v95
    %111 = vmatpush.msra.mxu0 %v94
    %112 = vmatpush.msra.mxu0 %v93
    %113 = vmatpush.msra.mxu0 %v92
    %114 = vmatpush.msra.mxu0 %v91
    %115 = vmatpush.msra.mxu0 %v90
    %116 = vmatpush.msra.mxu0 %v89
    %117 = vmatpush.msra.mxu0 %v88
    %118 = vmatpush.msra.mxu0 %v87
    %119 = vmatpush.msra.mxu0 %v86
    %120 = vmatpush.msra.mxu0 %v85
    %121 = vmatmul.f32.gmra.mxu0 %v81
    %v122 = vpop.f32.mrf.mxu0
    %v123 = vadd.f32 %v103, %v122
    %124 = vmatmul.f32.gmra.mxu0 %v82
    %v125 = vpop.f32.mrf.mxu0
    %v126 = vadd.f32 %v103, %v125
    %127 = vmatmul.f32.gmra.mxu0 %v83
    %v128 = vpop.f32.mrf.mxu0
    %v129 = vadd.f32 %v103, %v128
    %130 = vmatmul.f32.gmra.mxu0 %v84
    %v131 = vpop.f32.mrf.mxu0
    %v132 = vadd.f32 %v103, %v131
    %133 = vdwg.mxu0
    %v134 = vmax.f32 %v123, 0.0
    %v135 = vmax.f32 %v126, 0.0
    %v136 = vmax.f32 %v129, 0.0
    %v137 = vmax.f32 %v132, 0.0
    %v138 = vld [vmem:[%s5] sm:$0xff]
    %v139 = vld [vmem:[%s5 + $0x8] sm:$0xff]
    %v140 = vld [vmem:[%s5 + $0x10] sm:$0xff]
    %v141 = vld [vmem:[%s5 + $0x18] sm:$0xff]
    %v142 = vld [vmem:[%s5 + $0x20] sm:$0xff]
    %v143 = vld [vmem:[%s5 + $0x28] sm:$0xff]
    %v144 = vld [vmem:[%s5 + $0x30] sm:$0xff]
    %v145 = vld [vmem:[%s5 + $0x38] sm:$0xff]
    %v146 = vld [vmem:[%s5 + $0x40] sm:$0xff]
    %v147 = vld [vmem:[%s5 + $0x48] sm:$0xff]
    %v148 = vld [vmem:[%s5 + $0x50] sm:$0xff]
    %v149 = vld [vmem:[%s5 + $0x58] sm:$0xff]
    %v150 = vld [vmem:[%s5 + $0x60] sm:$0xff]
    %v151 = vld [vmem:[%s5 + $0x68] sm:$0xff]
    %v152 = vld [vmem:[%s5 + $0x70] sm:$0xff]
    %v153 = vld [vmem:[%s5 + $0x78] sm:$0xff]
    %v154 = vld [vmem:[%s6] sm:$0x1]
    %v156 = vperm.slane %v154, 0
    %158 = vmatpush.msra.mxu0 %v153
    %159 = vmatpush.msra.mxu0 %v152
    %160 = vmatpush.msra.mxu0 %v151
    %161 = vmatpush.msra.mxu0 %v150
    %162 = vmatpush.msra.mxu0 %v149
    %163 = vmatpush.msra.mxu0 %v148
    %164 = vmatpush.msra.mxu0 %v147
    %165 = vmatpush.msra.mxu0 %v146
    %166 = vmatpush.msra.mxu0 %v145
    %167 = vmatpush.msra.mxu0 %v144
    %168 = vmatpush.msra.mxu0 %v143
    %169 = vmatpush.msra.mxu0 %v142
    %170 = vmatpush.msra.mxu0 %v141
    %171 = vmatpush.msra.mxu0 %v140
    %172 = vmatpush.msra.mxu0 %v139
    %173 = vmatpush.msra.mxu0 %v138
    %174 = vmatmul.f32.gmra.mxu0 %v134
    %v175 = vpop.f32.mrf.mxu0
    %v176 = vadd.f32 %v156, %v175
    %177 = vmatmul.f32.gmra.mxu0 %v135
    %v178 = vpop.f32.mrf.mxu0
    %v179 = vadd.f32 %v156, %v178
    %180 = vmatmul.f32.gmra.mxu0 %v136
    %v181 = vpop.f32.mrf.mxu0
    %v182 = vadd.f32 %v156, %v181
    %183 = vmatmul.f32.gmra.mxu0 %v137
    %v184 = vpop.f32.mrf.mxu0
    %v185 = vadd.f32 %v156, %v184
    %186 = vdwg.mxu0
    %187 = vst [vmem:[#allocation2] sm:$0xff] %v176
    %188 = vst [vmem:[#allocation2 + $0x8] sm:$0xff] %v179
    %189 = vst [vmem:[#allocation2 + $0x10] sm:$0xff] %v182
    %190 = vst [vmem:[#allocation2 + $0x18] sm:$0xff] %v185
    // Predicated region
    $region30: #{_forward_impl.1} parent=1 // pred_check
      _
    $region31: #{_forward_impl.1} parent=1 // pred_check_branch
      %192 = sbr.rel (0) target = $region33
    $region32: #{_forward_impl.1} parent=1 // pred_region
      %194 = vsyncadd [#allocation3], 384
      %s195 = sshll.u32 [#allocation2], 4
      %s196 = int_to_ptr.vmem [resolvable:$true] %s195
      %s197 = sshll.u32 %s7, 4
      %s198 = int_to_ptr.hbm [resolvable:$true] %s197
      %203 = dma.vmem_to_hbm [thread:$0]  %s196, 128, %s198, [#allocation3], 128, 128, 8
    $region33: #{_forward_impl.1} parent=1 // pred_fallthru
      _
    // Predicated region
    $region34: #{_forward_impl.1} parent=1 // pred_check
      _
    $region35: #{_forward_impl.1} parent=1 // pred_check_branch
      %205 = sbr.rel (0) target = $region37
    $region36: #{_forward_impl.1} parent=1 // pred_region
      %207 = dma.done [#allocation3], 512
    $region37: #{_forward_impl.1} parent=1 // pred_fallthru
      _
    %208 = vsyncpa [#allocation3], 1

// kernel: _forward_impl.1
$region0: #{_forward_impl.1}
  #allocation0 [shape = 'u32[]', space=smem, size = 0x4, offset = 0x4, fixed_abs, tag = 'smem constant byte address 0x4 - core index']
  #allocation1 [shape = 'u32[72,128]{1,0:T(1,128)}', space=vmem, size = 0x9000, scoped, tag = 'internal scratch']
  %s0 = inlined_call_operand.vmem [shape: f32[8,32], index: 0, kind: input, shape index: {}]
  %s1 = inlined_call_operand.vmem [shape: f32[32,128], index: 1, kind: input, shape index: {}]
  %s2 = inlined_call_operand.vmem [shape: f32[1,128], index: 2, kind: input, shape index: {}]
  %s3 = inlined_call_operand.vmem [shape: f32[128,128], index: 3, kind: input, shape index: {}]
  %s4 = inlined_call_operand.vmem [shape: f32[1,128], index: 4, kind: input, shape index: {}]
  %s5 = inlined_call_operand.vmem [shape: f32[128,128], index: 5, kind: input, shape index: {}]
  %s6 = inlined_call_operand.vmem [shape: f32[1,128], index: 6, kind: input, shape index: {}]
  %s7 = inlined_call_operand.hbm [shape: f32[8,128], index: 7, kind: output, shape index: {}]
  %s8 = sld [smem:[#allocation0]]
  $region38: #{_forward_impl.1} parent=0
    _
  %s10 = ssub.s32 1, %s8
  %s11 = scalar_select 0, %s10, %s8
  $region1: #{_forward_impl.1} parent=0
    #allocation2 [shape = 'u8[16384]{0}', space=vmem, size = 0x4000, scoped, tag = 'output window, operand 0, single buffered']
    #allocation3 [shape = 's32[1]{0}', space=sflag, size = 0x4, scoped, tag = 'scoped memory for _forward_impl.1']
    %12 = vsyncpa [#allocation3], 0
    // Predicated region
    $region2: #{_forward_impl.1} parent=1 // pred_check
      _
    $region3: #{_forward_impl.1} parent=1 // pred_check_branch
      %14 = sbr.rel (0) target = $region5
    $region4: #{_forward_impl.1} parent=1 // pred_region
      _
    $region5: #{_forward_impl.1} parent=1 // pred_fallthru
      _
    // Predicated region
    $region6: #{_forward_impl.1} parent=1 // pred_check
      _
    $region7: #{_forward_impl.1} parent=1 // pred_check_branch
      %16 = sbr.rel (0) target = $region9
    $region8: #{_forward_impl.1} parent=1 // pred_region
      _
    $region9: #{_forward_impl.1} parent=1 // pred_fallthru
      _
    // Predicated region
    $region10: #{_forward_impl.1} parent=1 // pred_check
      _
    $region11: #{_forward_impl.1} parent=1 // pred_check_branch
      %18 = sbr.rel (0) target = $region13
    $region12: #{_forward_impl.1} parent=1 // pred_region
      _
    $region13: #{_forward_impl.1} parent=1 // pred_fallthru
      _
    // Predicated region
    $region14: #{_forward_impl.1} parent=1 // pred_check
      _
    $region15: #{_forward_impl.1} parent=1 // pred_check_branch
      %20 = sbr.rel (0) target = $region17
    $region16: #{_forward_impl.1} parent=1 // pred_region
      _
    $region17: #{_forward_impl.1} parent=1 // pred_fallthru
      _
    // Predicated region
    $region18: #{_forward_impl.1} parent=1 // pred_check
      _
    $region19: #{_forward_impl.1} parent=1 // pred_check_branch
      %22 = sbr.rel (0) target = $region21
    $region20: #{_forward_impl.1} parent=1 // pred_region
      _
    $region21: #{_forward_impl.1} parent=1 // pred_fallthru
      _
    // Predicated region
    $region22: #{_forward_impl.1} parent=1 // pred_check
      _
    $region23: #{_forward_impl.1} parent=1 // pred_check_branch
      %24 = sbr.rel (0) target = $region25
    $region24: #{_forward_impl.1} parent=1 // pred_region
      _
    $region25: #{_forward_impl.1} parent=1 // pred_fallthru
      _
    // Predicated region
    $region26: #{_forward_impl.1} parent=1 // pred_check
      _
    $region27: #{_forward_impl.1} parent=1 // pred_check_branch
      %26 = sbr.rel (0) target = $region29
    $region28: #{_forward_impl.1} parent=1 // pred_region
      _
    $region29: #{_forward_impl.1} parent=1 // pred_fallthru
      _
    %v27 = vld [vmem:[%s0] sm:$0xff]
    %v28 = vld [vmem:[%s0 + $0x8] sm:$0xff]
    %v29 = vld [vmem:[%s0 + $0x10] sm:$0xff]
    %v30 = vld [vmem:[%s0 + $0x18] sm:$0xff]
    %v31 = vld [vmem:[%s1] sm:$0xff]
    %v32 = vld [vmem:[%s1 + $0x8] sm:$0xff]
    %v33 = vld [vmem:[%s1 + $0x10] sm:$0xff]
    %v34 = vld [vmem:[%s1 + $0x18] sm:$0xff]
    %v35 = vld [vmem:[%s2] sm:$0x1]
    %v37 = vperm.slane %v35, 0
    %vm39 = vcmask 261120
    %v41 = vsel %vm39, %v27, 0
    %v44 = vsel %vm39, %v28, 0
    %v47 = vsel %vm39, %v29, 0
    %v50 = vsel %vm39, %v30, 0
    %52 = vmatpush.msra.mxu0 0.0
    %53 = vmatpush.msra.mxu0 0.0
    %54 = vmatpush.msra.mxu0 0.0
    %55 = vmatpush.msra.mxu0 0.0
    %56 = vmatpush.msra.mxu0 0.0
    %57 = vmatpush.msra.mxu0 0.0
    %58 = vmatpush.msra.mxu0 0.0
    %59 = vmatpush.msra.mxu0 0.0
    %60 = vmatpush.msra.mxu0 0.0
    %61 = vmatpush.msra.mxu0 0.0
    %62 = vmatpush.msra.mxu0 0.0
    %63 = vmatpush.msra.mxu0 0.0
    %64 = vmatpush.msra.mxu0 %v34
    %65 = vmatpush.msra.mxu0 %v33
    %66 = vmatpush.msra.mxu0 %v32
    %67 = vmatpush.msra.mxu0 %v31
    %68 = vmatmul.f32.gmra.mxu0 %v41
    %v69 = vpop.f32.mrf.mxu0
    %v70 = vadd.f32 %v37, %v69
    %71 = vmatmul.f32.gmra.mxu0 %v44
    %v72 = vpop.f32.mrf.mxu0
    %v73 = vadd.f32 %v37, %v72
    %74 = vmatmul.f32.gmra.mxu0 %v47
    %v75 = vpop.f32.mrf.mxu0
    %v76 = vadd.f32 %v37, %v75
    %77 = vmatmul.f32.gmra.mxu0 %v50
    %v78 = vpop.f32.mrf.mxu0
    %v79 = vadd.f32 %v37, %v78
    %80 = vdwg.mxu0
    %v81 = vmax.f32 %v70, 0.0
    %v82 = vmax.f32 %v73, 0.0
    %v83 = vmax.f32 %v76, 0.0
    %v84 = vmax.f32 %v79, 0.0
    %v85 = vld [vmem:[%s3] sm:$0xff]
    %v86 = vld [vmem:[%s3 + $0x8] sm:$0xff]
    %v87 = vld [vmem:[%s3 + $0x10] sm:$0xff]
    %v88 = vld [vmem:[%s3 + $0x18] sm:$0xff]
    %v89 = vld [vmem:[%s3 + $0x20] sm:$0xff]
    %v90 = vld [vmem:[%s3 + $0x28] sm:$0xff]
    %v91 = vld [vmem:[%s3 + $0x30] sm:$0xff]
    %v92 = vld [vmem:[%s3 + $0x38] sm:$0xff]
    %v93 = vld [vmem:[%s3 + $0x40] sm:$0xff]
    %v94 = vld [vmem:[%s3 + $0x48] sm:$0xff]
    %v95 = vld [vmem:[%s3 + $0x50] sm:$0xff]
    %v96 = vld [vmem:[%s3 + $0x58] sm:$0xff]
    %v97 = vld [vmem:[%s3 + $0x60] sm:$0xff]
    %v98 = vld [vmem:[%s3 + $0x68] sm:$0xff]
    %v99 = vld [vmem:[%s3 + $0x70] sm:$0xff]
    %v100 = vld [vmem:[%s3 + $0x78] sm:$0xff]
    %v101 = vld [vmem:[%s4] sm:$0x1]
    %v103 = vperm.slane %v101, 0
    %105 = vmatpush.msra.mxu0 %v100
    %106 = vmatpush.msra.mxu0 %v99
    %107 = vmatpush.msra.mxu0 %v98
    %108 = vmatpush.msra.mxu0 %v97
    %109 = vmatpush.msra.mxu0 %v96
    %110 = vmatpush.msra.mxu0 %v95
    %111 = vmatpush.msra.mxu0 %v94
    %112 = vmatpush.msra.mxu0 %v93
    %113 = vmatpush.msra.mxu0 %v92
    %114 = vmatpush.msra.mxu0 %v91
    %115 = vmatpush.msra.mxu0 %v90
    %116 = vmatpush.msra.mxu0 %v89
    %117 = vmatpush.msra.mxu0 %v88
    %118 = vmatpush.msra.mxu0 %v87
    %119 = vmatpush.msra.mxu0 %v86
    %120 = vmatpush.msra.mxu0 %v85
    %121 = vmatmul.f32.gmra.mxu0 %v81
    %v122 = vpop.f32.mrf.mxu0
    %v123 = vadd.f32 %v103, %v122
    %124 = vmatmul.f32.gmra.mxu0 %v82
    %v125 = vpop.f32.mrf.mxu0
    %v126 = vadd.f32 %v103, %v125
    %127 = vmatmul.f32.gmra.mxu0 %v83
    %v128 = vpop.f32.mrf.mxu0
    %v129 = vadd.f32 %v103, %v128
    %130 = vmatmul.f32.gmra.mxu0 %v84
    %v131 = vpop.f32.mrf.mxu0
    %v132 = vadd.f32 %v103, %v131
    %133 = vdwg.mxu0
    %v134 = vmax.f32 %v123, 0.0
    %v135 = vmax.f32 %v126, 0.0
    %v136 = vmax.f32 %v129, 0.0
    %v137 = vmax.f32 %v132, 0.0
    %v138 = vld [vmem:[%s5] sm:$0xff]
    %v139 = vld [vmem:[%s5 + $0x8] sm:$0xff]
    %v140 = vld [vmem:[%s5 + $0x10] sm:$0xff]
    %v141 = vld [vmem:[%s5 + $0x18] sm:$0xff]
    %v142 = vld [vmem:[%s5 + $0x20] sm:$0xff]
    %v143 = vld [vmem:[%s5 + $0x28] sm:$0xff]
    %v144 = vld [vmem:[%s5 + $0x30] sm:$0xff]
    %v145 = vld [vmem:[%s5 + $0x38] sm:$0xff]
    %v146 = vld [vmem:[%s5 + $0x40] sm:$0xff]
    %v147 = vld [vmem:[%s5 + $0x48] sm:$0xff]
    %v148 = vld [vmem:[%s5 + $0x50] sm:$0xff]
    %v149 = vld [vmem:[%s5 + $0x58] sm:$0xff]
    %v150 = vld [vmem:[%s5 + $0x60] sm:$0xff]
    %v151 = vld [vmem:[%s5 + $0x68] sm:$0xff]
    %v152 = vld [vmem:[%s5 + $0x70] sm:$0xff]
    %v153 = vld [vmem:[%s5 + $0x78] sm:$0xff]
    %v154 = vld [vmem:[%s6] sm:$0x1]
    %v156 = vperm.slane %v154, 0
    %158 = vmatpush.msra.mxu0 %v153
    %159 = vmatpush.msra.mxu0 %v152
    %160 = vmatpush.msra.mxu0 %v151
    %161 = vmatpush.msra.mxu0 %v150
    %162 = vmatpush.msra.mxu0 %v149
    %163 = vmatpush.msra.mxu0 %v148
    %164 = vmatpush.msra.mxu0 %v147
    %165 = vmatpush.msra.mxu0 %v146
    %166 = vmatpush.msra.mxu0 %v145
    %167 = vmatpush.msra.mxu0 %v144
    %168 = vmatpush.msra.mxu0 %v143
    %169 = vmatpush.msra.mxu0 %v142
    %170 = vmatpush.msra.mxu0 %v141
    %171 = vmatpush.msra.mxu0 %v140
    %172 = vmatpush.msra.mxu0 %v139
    %173 = vmatpush.msra.mxu0 %v138
    %174 = vmatmul.f32.gmra.mxu0 %v134
    %v175 = vpop.f32.mrf.mxu0
    %v176 = vadd.f32 %v156, %v175
    %177 = vmatmul.f32.gmra.mxu0 %v135
    %v178 = vpop.f32.mrf.mxu0
    %v179 = vadd.f32 %v156, %v178
    %180 = vmatmul.f32.gmra.mxu0 %v136
    %v181 = vpop.f32.mrf.mxu0
    %v182 = vadd.f32 %v156, %v181
    %183 = vmatmul.f32.gmra.mxu0 %v137
    %v184 = vpop.f32.mrf.mxu0
    %v185 = vadd.f32 %v156, %v184
    %186 = vdwg.mxu0
    %187 = vst [vmem:[#allocation2] sm:$0xff] %v176
    %188 = vst [vmem:[#allocation2 + $0x8] sm:$0xff] %v179
    %189 = vst [vmem:[#allocation2 + $0x10] sm:$0xff] %v182
    %190 = vst [vmem:[#allocation2 + $0x18] sm:$0xff] %v185
    // Predicated region
    $region30: #{_forward_impl.1} parent=1 // pred_check
      _
    $region31: #{_forward_impl.1} parent=1 // pred_check_branch
      %192 = sbr.rel (0) target = $region33
    $region32: #{_forward_impl.1} parent=1 // pred_region
      %194 = vsyncadd [#allocation3], 384
      %s195 = sshll.u32 [#allocation2], 4
      %s196 = int_to_ptr.vmem [resolvable:$true] %s195
      %s197 = sshll.u32 %s7, 4
      %s198 = int_to_ptr.hbm [resolvable:$true] %s197
      %203 = dma.vmem_to_hbm [thread:$0]  %s196, 128, %s198, [#allocation3], 128, 128, 8
    $region33: #{_forward_impl.1} parent=1 // pred_fallthru
      _
    // Predicated region
    $region34: #{_forward_impl.1} parent=1 // pred_check
      _
    $region35: #{_forward_impl.1} parent=1 // pred_check_branch
      %205 = sbr.rel (0) target = $region37
    $region36: #{_forward_impl.1} parent=1 // pred_region
      %207 = dma.done [#allocation3], 512
    $region37: #{_forward_impl.1} parent=1 // pred_fallthru
      _
    %208 = vsyncpa [#allocation3], 1

</llo_original>
